<compile_context>
chip_gen: v5e
topology: v5e:2x2
jax: 0.10.0
libtpu: 0.0.40
codegen_flags: <defaults>
</compile_context>

<pallas_src>
import jax
import jax.numpy as jnp
from jax.experimental import pallas as pl
from jax.experimental.pallas import tpu as pltpu


# ---------------------------------------------------------------------------
# Kernels
# ---------------------------------------------------------------------------

def _copy_kernel(pe_ref, out_ref):
    # Straight VMEM copy of one (tile_rows, n_cols) block.
    out_ref[...] = pe_ref[...]


def _add_pe_kernel(x_ref, pe_ref, out_ref):
    # x_ref / out_ref: (1, tile_s, d_model); pe_ref: (tile_s, d_model).
    out_ref[...] = (x_ref[...] + pe_ref[...][None, :, :]).astype(out_ref.dtype)


# ---------------------------------------------------------------------------
# Helpers
# ---------------------------------------------------------------------------

def _sublane_min(dtype):
    # Packed-sublane minimum: 8 for 32-bit, 16 for 16-bit, 32 for 8-bit dtypes.
    itemsize = jnp.dtype(dtype).itemsize
    return max(8, 32 // max(1, itemsize))


def _pick_tile_rows(n_rows, row_bytes, sub_min, tile_budget_bytes):
    """Sublane-aligned row count: as many rows as fit the per-tile budget,
    capped at n_rows rounded up to sublane alignment (the cdiv grid masks the
    ragged end). Always a multiple of sub_min; may exceed the nominal budget
    only when a single row group (sub_min * row_bytes) is already larger."""
    budget_rows = (tile_budget_bytes // max(1, row_bytes)) // sub_min * sub_min
    budget_rows = max(sub_min, budget_rows)
    n_rows_aligned = ((n_rows + sub_min - 1) // sub_min) * sub_min
    return min(budget_rows, n_rows_aligned)


# ---------------------------------------------------------------------------
# Standalone forward: pe[:, :seq_len, :]  (module semantics)
# ---------------------------------------------------------------------------

def learnable_positional_embedding(pe, seq_len, *,
                                   tile_budget_bytes=6 * 1024 * 1024,
                                   vmem_limit_bytes=32 * 1024 * 1024):
    """Return pe[:, :seq_len, :] computed through a Pallas kernel.

    pe:       (1, max_len, d_model) array (the learnable positional table)
    seq_len:  static int, number of positions to take (= x.shape[1])
    """
    one, max_len, d_model = pe.shape
    assert one == 1
    assert 0 < seq_len <= max_len
    dtype = pe.dtype
    itemsize = jnp.dtype(dtype).itemsize
    sub_min = _sublane_min(dtype)

    # Lane-aware 2-D layout (drop the unit leading dim everywhere; reshapes of
    # a row-major contiguous prefix are free).
    flat_rows = (seq_len * d_model) // 128
    if d_model % 128 == 0:
        # Already lane-dense.
        in2d = pe.reshape(max_len, d_model)
        n_rows_out, n_cols = seq_len, d_model
    elif ((seq_len * d_model) % 128 == 0
          and (max_len * d_model) % 128 == 0
          and flat_rows % sub_min == 0):
        # The slice is a contiguous prefix of the row-major flattening: present
        # it as dense (rows, 128) slabs -> full-lane, unmasked stores.
        in2d = pe.reshape((max_len * d_model) // 128, 128)
        n_rows_out, n_cols = flat_rows, 128
    else:
        # Sub-128 feature dim: keep full-extent lane dim (masked stores, but
        # this regime is tiny).
        in2d = pe.reshape(max_len, d_model)
        n_rows_out, n_cols = seq_len, d_model

    row_bytes = n_cols * itemsize
    tile_rows = _pick_tile_rows(n_rows_out, row_bytes, sub_min, tile_budget_bytes)
    grid = (pl.cdiv(n_rows_out, tile_rows),)
    bytes_moved = 2 * n_rows_out * n_cols * itemsize  # HBM read + HBM write

    out2d = pl.pallas_call(
        _copy_kernel,
        out_shape=jax.ShapeDtypeStruct((n_rows_out, n_cols), dtype),
        grid_spec=pltpu.PrefetchScalarGridSpec(
            num_scalar_prefetch=0,
            grid=grid,
            in_specs=[
                # Block i of the output maps to rows [i*tile_rows, ...) of the
                # (reshaped) positional table: leading-slice semantics. The
                # partial last block (if any) is masked on the store side and
                # always in- or masked-out-of-bounds on the read side.
                pl.BlockSpec((tile_rows, n_cols), lambda i: (i, 0)),
            ],
            out_specs=pl.BlockSpec((tile_rows, n_cols), lambda i: (i, 0)),
        ),
        compiler_params=pltpu.CompilerParams(
            dimension_semantics=("parallel",),
            # ~4x tile resident with double-buffered in+out (~24 MiB); explicit
            # limit keeps v5e from tripping its 16 MiB scoped default.
            vmem_limit_bytes=vmem_limit_bytes,
        ),
        cost_estimate=pl.CostEstimate(
            flops=0, transcendentals=0, bytes_accessed=bytes_moved),
    )(in2d)

    return out2d.reshape(1, seq_len, d_model)


# ---------------------------------------------------------------------------
# Fused consumer: out = x + pe[:, :seq_len, :]   (recommended usage)
# ---------------------------------------------------------------------------

def add_positional_embedding(x, pe, *,
                             tile_budget_bytes=6 * 1024 * 1024,
                             vmem_limit_bytes=32 * 1024 * 1024):
    """Fused `x + pe[:, :x.shape[1], :]` — avoids materializing the slice."""
    batch, seq_len, d_model = x.shape
    one, max_len, d_model_pe = pe.shape
    assert one == 1 and d_model_pe == d_model
    assert 0 < seq_len <= max_len
    dtype = x.dtype
    itemsize = jnp.dtype(dtype).itemsize
    sub_min = _sublane_min(dtype)

    pe2d = pe.reshape(max_len, d_model)
    row_bytes = d_model * itemsize
    # x tile + pe tile + out tile are all resident -> a third of the budget each.
    tile_s = _pick_tile_rows(seq_len, row_bytes, sub_min, tile_budget_bytes // 3)
    n_seq_tiles = pl.cdiv(seq_len, tile_s)
    # seq-tile axis outermost so the pe block index is unchanged across the
    # inner batch axis (no pe re-fetch per batch element).
    grid = (n_seq_tiles, batch)
    bytes_moved = (2 * batch * seq_len + seq_len) * d_model * itemsize

    return pl.pallas_call(
        _add_pe_kernel,
        out_shape=jax.ShapeDtypeStruct((batch, seq_len, d_model), dtype),
        grid_spec=pltpu.PrefetchScalarGridSpec(
            num_scalar_prefetch=0,
            grid=grid,
            in_specs=[
                pl.BlockSpec((1, tile_s, d_model), lambda i, b: (b, i, 0)),
                pl.BlockSpec((tile_s, d_model), lambda i, b: (i, 0)),
            ],
            out_specs=pl.BlockSpec((1, tile_s, d_model), lambda i, b: (b, i, 0)),
        ),
        compiler_params=pltpu.CompilerParams(
            dimension_semantics=("parallel", "parallel"),
            vmem_limit_bytes=vmem_limit_bytes,
        ),
        cost_estimate=pl.CostEstimate(
            flops=batch * seq_len * d_model, transcendentals=0,
            bytes_accessed=bytes_moved),
    )(x, pe2d)


# ---------------------------------------------------------------------------
# Self-test
# ---------------------------------------------------------------------------

if __name__ == "__main__":
    # Small, deterministic setup consistent with the module.
    batch, seq, d_model, max_len = 2, 8, 32, 64

    key = jax.random.PRNGKey(0)
    k_pe, k_x = jax.random.split(key)

    # Parameter init mirrors: pe = 0.1 * randn(max_len, d_model); unsqueeze(0)
    pe = 0.1 * jax.random.normal(k_pe, (max_len, d_model), dtype=jnp.float32)
    pe = pe[None, :, :]  # (1, max_len, d_model)

    # Input x only contributes its seq length (Dim.seq == 1).
    x = jax.random.normal(k_x, (batch, seq, d_model), dtype=jnp.float32)

    # Module forward: the slice itself.
    out = learnable_positional_embedding(pe, x.shape[1])
    out = jax.block_until_ready(out)
    ref = pe[:, :seq, :]
    assert out.shape == (1, seq, d_model), out.shape
    assert jnp.allclose(out, ref), "slice kernel mismatch vs reference"

    # Fused consumer path (how the embedding is actually consumed in a model).
    fused = add_positional_embedding(x, pe)
    fused = jax.block_until_ready(fused)
    assert fused.shape == (batch, seq, d_model), fused.shape
    assert jnp.allclose(fused, x + pe[:, :seq, :], atol=1e-6), \
        "fused kernel mismatch vs reference"

    print("KERNEL_OK")
</pallas_src>

<mosaic_0001>
module attributes {stable_mosaic.version = 11 : i64} {
  func.func @_copy_kernel(%arg0: i32, %arg1: memref<8x32xf32, #tpu.memory_space<vmem>>, %arg2: memref<8x32xf32, #tpu.memory_space<vmem>>) attributes {dimension_semantics = [#tpu.dimension_semantics<parallel>], iteration_bounds = array<i64: 1>, scalar_prefetch = 0 : i64, scratch_operands = 0 : i64, tpu.core_type = #tpu.core_type<tc>, window_params = [{transform_indices = @transform_0, window_bounds = array<i64: 8, 32>}, {transform_indices = @transform_1, window_bounds = array<i64: 8, 32>}]} {
    %c0 = arith.constant 0 : index
    %c0_0 = arith.constant 0 : index
    %0 = vector.load %arg1[%c0, %c0_0] : memref<8x32xf32, #tpu.memory_space<vmem>>, vector<8x32xf32>
    %c0_1 = arith.constant 0 : index
    %c0_2 = arith.constant 0 : index
    %1 = vector.load %arg2[%c0_1, %c0_2] : memref<8x32xf32, #tpu.memory_space<vmem>>, vector<8x32xf32>
    tpu.vector_store %arg2[%c0_1, %c0_2], %0 {strides = array<i32>} : memref<8x32xf32, #tpu.memory_space<vmem>>, vector<8x32xf32>,
    return
  }
  func.func @transform_0(%arg0: i32) -> (i32, i32) {
    %c0_i32 = arith.constant 0 : i32
    %c0_i32_0 = arith.constant 0 : i32
    return %arg0, %c0_i32 : i32, i32
  }
  func.func @transform_1(%arg0: i32) -> (i32, i32) {
    %c0_i32 = arith.constant 0 : i32
    %c0_i32_0 = arith.constant 0 : i32
    return %arg0, %c0_i32 : i32, i32
  }
}

</mosaic_0001>

<llo_original>
// kernel: tpu_custom_call.1
$region0: #{tpu_custom_call.1}
  #allocation0 [shape = 'u32[]', space=smem, size = 0x4, offset = 0x4, fixed_abs, tag = 'smem constant byte address 0x4 - core index']
  #allocation1 [shape = 'u32[72,128]{1,0:T(1,128)}', space=vmem, size = 0x9000, scoped, tag = 'internal scratch']
  %s0 = inlined_call_operand.vmem [shape: f32[64,32], index: 0, kind: input, shape index: {}]
  %s1 = inlined_call_operand.hbm [shape: f32[8,32], index: 1, kind: output, shape index: {}]
  %s2 = sld [smem:[#allocation0]]
  $region14: #{tpu_custom_call.1} parent=0
    _
  %s4 = ssub.s32 1, %s2
  %s5 = scalar_select 0, %s4, %s2
  $region1: #{tpu_custom_call.1} parent=0
    #allocation2 [shape = 'u8[4096]{0}', space=vmem, size = 0x1000, scoped, tag = 'output window, operand 0, single buffered']
    #allocation3 [shape = 's32[1]{0}', space=sflag, size = 0x4, scoped, tag = 'scoped memory for tpu_custom_call.1']
    %6 = vsyncpa [#allocation3], 0
    // Predicated region
    $region2: #{tpu_custom_call.1} parent=1 // pred_check
      _
    $region3: #{tpu_custom_call.1} parent=1 // pred_check_branch
      %8 = sbr.rel (0) target = $region5
    $region4: #{tpu_custom_call.1} parent=1 // pred_region
      _
    $region5: #{tpu_custom_call.1} parent=1 // pred_fallthru
      _
    %v9 = vld [vmem:[%s0] sm:$0xff]
    %vm10 = vcmask 261120
    %11 = vst.msk [vmem:[#allocation2] sm:$0xff] %vm10, %v9
    // Predicated region
    $region6: #{tpu_custom_call.1} parent=1 // pred_check
      _
    $region7: #{tpu_custom_call.1} parent=1 // pred_check_branch
      %13 = sbr.rel (0) target = $region9
    $region8: #{tpu_custom_call.1} parent=1 // pred_region
      %15 = vsyncadd [#allocation3], 0
      %s17 = sshll.u32 [#allocation2], 4
      %s18 = int_to_ptr.vmem [resolvable:$true] %s17
      %s19 = sshll.u32 %s1, 4
      %s20 = int_to_ptr.hbm [resolvable:$true] %s19
      %22 = dma.vmem_to_hbm [thread:$0]  %s18, 128, %s20, [#allocation3]
    $region9: #{tpu_custom_call.1} parent=1 // pred_fallthru
      _
    // Predicated region
    $region10: #{tpu_custom_call.1} parent=1 // pred_check
      _
    $region11: #{tpu_custom_call.1} parent=1 // pred_check_branch
      %24 = sbr.rel (0) target = $region13
    $region12: #{tpu_custom_call.1} parent=1 // pred_region
      %26 = dma.done [#allocation3], 128
    $region13: #{tpu_custom_call.1} parent=1 // pred_fallthru
      _
    %27 = vsyncpa [#allocation3], 1

</llo_original>
